<compile_context>
chip_gen: v7x
topology: tpu7x:2x2x1
jax: 0.10.0
libtpu: 0.0.40
codegen_flags: <defaults>
</compile_context>

<pallas_src>
import jax
import jax.numpy as jnp
from jax.experimental import pallas as pl
from jax.experimental.pallas import tpu as pltpu

N_CATEGORY = 61  # config['n_category'] in MAMO (LastFM)


def _lf_item_kernel(x_ref, w_ref, o_ref):
    # Cast in-kernel (free on the VPU) — mirrors category_idx.float().
    x = x_ref[...].astype(jnp.float32)
    # Select the first 61 feature columns; columns >= 61 are zeroed so any
    # garbage (even NaN/Inf) in the non-category features cannot propagate.
    col = jax.lax.broadcasted_iota(jnp.int32, x.shape, dimension=1)
    x = jnp.where(col < N_CATEGORY, x, 0.0)
    # MXU matmul against the (resident) zero-padded weight, then sigmoid.
    z = jnp.dot(x, w_ref[...], preferred_element_type=jnp.float32)
    o_ref[...] = jax.nn.sigmoid(z).astype(o_ref.dtype)


def lf_item_loading(x2, weight, *, block_rows=512, min_pallas_batch=512):
    """Pallas equivalent of LFItemLoading.forward.

    Args:
      x2:     (batch, n_features) array, n_features >= 61 (any real dtype).
      weight: (61, embedding_dim) linear weight (no bias), transposed
              relative to torch.nn.Linear.weight so we compute x @ W.
      block_rows: batch rows per grid step (pipelined tile size).
      min_pallas_batch: below this batch size, fall back to plain XLA
              (launch + DMA-setup overhead would dominate the tiny matmul).
    Returns:
      (batch, embedding_dim) float32 sigmoid(x2[:, :61] @ weight).
    """
    batch, k_in = x2.shape
    assert weight.shape[0] == N_CATEGORY and k_in >= N_CATEGORY
    emb = weight.shape[1]

    if batch < min_pallas_batch:
        # Tiny problem: let XLA fuse sigmoid(x @ W); Pallas has nothing to hide.
        cat = x2[:, :N_CATEGORY].astype(jnp.float32)
        return jax.nn.sigmoid(cat @ weight.astype(jnp.float32))

    # One-time weight padding to x2's feature width (rows 61.. are zero).
    # Lets the kernel consume raw x2 rows with no wrapper-side slice/cast.
    w_pad = (
        jnp.zeros((k_in, emb), dtype=jnp.float32)
        .at[:N_CATEGORY, :]
        .set(weight.astype(jnp.float32))
    )

    tb = min(block_rows, batch)
    grid = (pl.cdiv(batch, tb),)

    return pl.pallas_call(
        _lf_item_kernel,
        out_shape=jax.ShapeDtypeStruct((batch, emb), jnp.float32),
        grid=grid,
        in_specs=[
            # Batch-tiled activations: Pallas double-buffers these DMAs.
            pl.BlockSpec((tb, k_in), lambda i: (i, 0)),
            # Weight: constant index_map -> stays resident in VMEM.
            pl.BlockSpec((k_in, emb), lambda i: (0, 0)),
        ],
        out_specs=pl.BlockSpec((tb, emb), lambda i: (i, 0)),
        compiler_params=pltpu.CompilerParams(
            dimension_semantics=("parallel",),  # megacore split on v7x
        ),
    )(x2, w_pad)


def _reference(x2, weight):
    category_idx = x2[:, 0:N_CATEGORY].astype(jnp.float32)
    return jax.nn.sigmoid(category_idx @ weight.astype(jnp.float32))


if __name__ == "__main__":
    key = jax.random.PRNGKey(0)
    k_x, k_w, k_x2 = jax.random.split(key, 3)

    n_features = 64          # >= 61; only the first 61 are used
    embedding_dim = 32

    # torch.nn.Linear default init ~ U(-1/sqrt(in), 1/sqrt(in)); stored (in, out).
    bound = 1.0 / (N_CATEGORY ** 0.5)
    weight = jax.random.uniform(
        k_w, (N_CATEGORY, embedding_dim), dtype=jnp.float32,
        minval=-bound, maxval=bound)

    # --- Small single-block case (forces the Pallas path). ---
    batch = 8
    x2 = jax.random.normal(k_x, (batch, n_features), dtype=jnp.float32)
    out = lf_item_loading(x2, weight, min_pallas_batch=1)
    out = jax.block_until_ready(out)
    ref = _reference(x2, weight)
    assert out.shape == (batch, embedding_dim)
    assert jnp.allclose(out, ref, atol=1e-5, rtol=1e-5), "mismatch (single block)"

    # --- Multi-step grid case (exercises batch tiling / pipelining). ---
    batch2 = 16
    x2b = jax.random.normal(k_x2, (batch2, n_features), dtype=jnp.float32)
    out2 = lf_item_loading(x2b, weight, block_rows=8, min_pallas_batch=1)
    out2 = jax.block_until_ready(out2)
    ref2 = _reference(x2b, weight)
    assert out2.shape == (batch2, embedding_dim)
    assert jnp.allclose(out2, ref2, atol=1e-5, rtol=1e-5), "mismatch (tiled)"

    print("KERNEL_OK")
</pallas_src>

<mosaic_0001>
module attributes {stable_mosaic.version = 11 : i64} {
  func.func @_lf_item_kernel(%arg0: i32, %arg1: memref<8x64xf32, #tpu.memory_space<vmem>>, %arg2: memref<64x32xf32, #tpu.memory_space<vmem>>, %arg3: memref<8x32xf32, #tpu.memory_space<vmem>>) attributes {dimension_semantics = [#tpu.dimension_semantics<parallel>], iteration_bounds = array<i64: 1>, scalar_prefetch = 0 : i64, scratch_operands = 0 : i64, tpu.core_type = #tpu.core_type<tc>, window_params = [{transform_indices = @transform_0, window_bounds = array<i64: 8, 64>}, {pipeline_mode = #tpu.pipeline_mode<synchronous>, transform_indices = @transform_1, window_bounds = array<i64: 64, 32>}, {transform_indices = @transform_2, window_bounds = array<i64: 8, 32>}]} {
    %c0 = arith.constant 0 : index
    %c0_0 = arith.constant 0 : index
    %0 = vector.load %arg1[%c0, %c0_0] : memref<8x64xf32, #tpu.memory_space<vmem>>, vector<8x64xf32>
    %1 = tpu.iota {dimensions = array<i32: 1>} : vector<8x64xi32>
    %c61_i32 = arith.constant 61 : i32
    %2 = vector.broadcast %c61_i32 : i32 to vector<8x64xi32>
    %3 = arith.cmpi slt, %1, %2 : vector<8x64xi32>
    %cst = arith.constant 0.000000e+00 : f32
    %4 = vector.broadcast %cst : f32 to vector<8x64xf32>
    %5 = arith.select %3, %0, %4 : vector<8x64xi1>, vector<8x64xf32>
    %c0_1 = arith.constant 0 : index
    %c0_2 = arith.constant 0 : index
    %6 = vector.load %arg2[%c0_1, %c0_2] : memref<64x32xf32, #tpu.memory_space<vmem>>, vector<64x32xf32>
    %cst_3 = arith.constant dense<0.000000e+00> : vector<8x32xf32>
    %7 = tpu.matmul %5, %6, %cst_3 {dimension_numbers = #tpu.dot_dimension_numbers<[1], [0], [0], [1], [0, 0, 1, 1], [], []>} : vector<8x64xf32>, vector<64x32xf32>, vector<8x32xf32> -> vector<8x32xf32>
    %8 = arith.negf %7 : vector<8x32xf32>
    %9 = math.exp %8 : vector<8x32xf32>
    %cst_4 = arith.constant 1.000000e+00 : f32
    %10 = vector.broadcast %cst_4 : f32 to vector<8x32xf32>
    %11 = arith.addf %10, %9 : vector<8x32xf32>
    %12 = arith.divf %10, %11 : vector<8x32xf32>
    %c0_5 = arith.constant 0 : index
    %c0_6 = arith.constant 0 : index
    %13 = vector.load %arg3[%c0_5, %c0_6] : memref<8x32xf32, #tpu.memory_space<vmem>>, vector<8x32xf32>
    tpu.vector_store %arg3[%c0_5, %c0_6], %12 {strides = array<i32>} : memref<8x32xf32, #tpu.memory_space<vmem>>, vector<8x32xf32>,
    return
  }
  func.func @transform_0(%arg0: i32) -> (i32, i32) {
    %c0_i32 = arith.constant 0 : i32
    %c0_i32_0 = arith.constant 0 : i32
    return %arg0, %c0_i32 : i32, i32
  }
  func.func @transform_1(%arg0: i32) -> (i32, i32) {
    %c0_i32 = arith.constant 0 : i32
    %c0_i32_0 = arith.constant 0 : i32
    %c0_i32_1 = arith.constant 0 : i32
    return %c0_i32, %c0_i32_0 : i32, i32
  }
  func.func @transform_2(%arg0: i32) -> (i32, i32) {
    %c0_i32 = arith.constant 0 : i32
    %c0_i32_0 = arith.constant 0 : i32
    return %arg0, %c0_i32 : i32, i32
  }
}

</mosaic_0001>

<llo_original>
// kernel: tpu_custom_call.1
$region0: #{tpu_custom_call.1}
  #allocation0 [shape = 'u32[]', space=smem, size = 0x4, offset = 0x4, fixed_abs, tag = 'smem constant byte address 0x4 - core index']
  #allocation1 [shape = 'u32[144,128]{1,0:T(1,128)}', space=vmem, size = 0x12000, scoped, tag = 'internal scratch']
  %s0 = inlined_call_operand.vmem [shape: f32[8,64], index: 0, kind: input, shape index: {}]
  %s1 = inlined_call_operand.vmem [shape: f32[64,32], index: 1, kind: input, shape index: {}]
  %s2 = inlined_call_operand.hbm [shape: f32[8,32], index: 2, kind: output, shape index: {}]
  %s3 = sld [smem:[#allocation0]]
  $region18: #{tpu_custom_call.1} parent=0
    _
  %s5 = ssub.s32 1, %s3
  %s6 = scalar_select 0, %s5, %s3
  $region1: #{tpu_custom_call.1} parent=0
    #allocation2 [shape = 'u8[4096]{0}', space=vmem, size = 0x1000, scoped, tag = 'output window, operand 0, single buffered']
    #allocation3 [shape = 's32[1]{0}', space=sflag, size = 0x4, scoped, tag = 'scoped memory for tpu_custom_call.1']
    %7 = vsyncpa [#allocation3], 0
    // Predicated region
    $region2: #{tpu_custom_call.1} parent=1 // pred_check
      _
    $region3: #{tpu_custom_call.1} parent=1 // pred_check_branch
      %9 = sbr.rel (0) target = $region5
    $region4: #{tpu_custom_call.1} parent=1 // pred_region
      _
    $region5: #{tpu_custom_call.1} parent=1 // pred_fallthru
      _
    // Predicated region
    $region6: #{tpu_custom_call.1} parent=1 // pred_check
      _
    $region7: #{tpu_custom_call.1} parent=1 // pred_check_branch
      %11 = sbr.rel (0) target = $region9
    $region8: #{tpu_custom_call.1} parent=1 // pred_region
      _
    $region9: #{tpu_custom_call.1} parent=1 // pred_fallthru
      _
    %v12 = vld [vmem:[%s0] sm:$0xff]
    %v13 = vlaneseq
    %v14 = vand.u32 %v13, 127
    %vm15 = vcmp.lt.s32.totalorder %v14, 61
    %v16 = vsel %vm15, %v12, 0.0
    %v17 = vld [vmem:[%s1] sm:$0xff]
    %v18 = vld [vmem:[%s1 + $0x8] sm:$0xff]
    %v19 = vld [vmem:[%s1 + $0x10] sm:$0xff]
    %v20 = vld [vmem:[%s1 + $0x18] sm:$0xff]
    %v21 = vld [vmem:[%s1 + $0x20] sm:$0xff]
    %v22 = vld [vmem:[%s1 + $0x28] sm:$0xff]
    %v23 = vld [vmem:[%s1 + $0x30] sm:$0xff]
    %v24 = vld [vmem:[%s1 + $0x38] sm:$0xff]
    %vm25 = vcmask 523264
    %v27 = vsel %vm25, %v16, 0
    %29 = vmatprep.subr.mxu0 0.0
    %30 = vmatpush1.msra.mxu0 %v17
    %31 = vmatprep.subr.mxu0 0.0
    %32 = vmatpush1.msra.mxu0 %v18
    %33 = vmatprep.subr.mxu0 0.0
    %34 = vmatpush1.msra.mxu0 %v19
    %35 = vmatprep.subr.mxu0 0.0
    %36 = vmatpush1.msra.mxu0 %v20
    %37 = vmatprep.subr.mxu0 0.0
    %38 = vmatpush1.msra.mxu0 %v21
    %39 = vmatprep.subr.mxu0 0.0
    %40 = vmatpush1.msra.mxu0 %v22
    %41 = vmatprep.subr.mxu0 0.0
    %42 = vmatpush1.msra.mxu0 %v23
    %43 = vmatprep.subr.mxu0 0.0
    %44 = vmatpush1.msra.mxu0 %v24
    %45 = vmatprep.subr.mxu0 0.0
    %46 = vmatpush1.msra.mxu0 0.0
    %47 = vmatprep.subr.mxu0 0.0
    %48 = vmatpush1.msra.mxu0 0.0
    %49 = vmatprep.subr.mxu0 0.0
    %50 = vmatpush1.msra.mxu0 0.0
    %51 = vmatprep.subr.mxu0 0.0
    %52 = vmatpush1.msra.mxu0 0.0
    %53 = vmatprep.subr.mxu0 0.0
    %54 = vmatpush1.msra.mxu0 0.0
    %55 = vmatprep.subr.mxu0 0.0
    %56 = vmatpush1.msra.mxu0 0.0
    %57 = vmatprep.subr.mxu0 0.0
    %58 = vmatpush1.msra.mxu0 0.0
    %59 = vmatprep.subr.mxu0 0.0
    %60 = vmatpush1.msra.mxu0 0.0
    %61 = vmatprep.subr.mxu0 0.0
    %62 = vmatpush1.msra.mxu0 0.0
    %63 = vmatprep.subr.mxu0 0.0
    %64 = vmatpush1.msra.mxu0 0.0
    %65 = vmatprep.subr.mxu0 0.0
    %66 = vmatpush1.msra.mxu0 0.0
    %67 = vmatprep.subr.mxu0 0.0
    %68 = vmatpush1.msra.mxu0 0.0
    %69 = vmatprep.subr.mxu0 0.0
    %70 = vmatpush1.msra.mxu0 0.0
    %71 = vmatprep.subr.mxu0 0.0
    %72 = vmatpush1.msra.mxu0 0.0
    %73 = vmatprep.subr.mxu0 0.0
    %74 = vmatpush1.msra.mxu0 0.0
    %75 = vmatprep.subr.mxu0 0.0
    %76 = vmatpush1.msra.mxu0 0.0
    %77 = vmatprep.subr.mxu0 0.0
    %78 = vmatpush1.msra.mxu0 0.0
    %79 = vmatprep.subr.mxu0 0.0
    %80 = vmatpush1.msra.mxu0 0.0
    %81 = vmatprep.subr.mxu0 0.0
    %82 = vmatpush1.msra.mxu0 0.0
    %83 = vmatprep.subr.mxu0 0.0
    %84 = vmatpush1.msra.mxu0 0.0
    %85 = vmatprep.subr.mxu0 0.0
    %86 = vmatpush1.msra.mxu0 0.0
    %87 = vmatprep.subr.mxu0 0.0
    %88 = vmatpush1.msra.mxu0 0.0
    %89 = vmatprep.subr.mxu0 0.0
    %90 = vmatpush1.msra.mxu0 0.0
    %91 = vmatprep.subr.mxu0 0.0
    %92 = vmatpush1.msra.mxu0 0.0
    %93 = vmatprep.mubr.f32.mxu0 0.0
    %94 = vmatmul.mubr.f32.gmra.mrb[0].mxu0 %v27
    %v95 = vpop.f32.mrb[0].mxu0
    %v96 = vadd.f32 0.0, %v95
    %v97 = vpop.f32.mrb[0].mxu0
    %98 = vdwg.mxu0
    %v99 = vxor.u32 %v96, 2147483648
    %v100 = vmul.f32 %v99, 1.442695
    %v101 = vpow.pop %v100
    %v102 = vadd.f32 %v101, 1.0
    %v103 = vrcp.pop %v102
    %v104 = vmul.f32 1.0, %v103
    %vm105 = vcmask 261120
    %106 = vst.msk [vmem:[#allocation2] sm:$0xff] %vm105, %v104
    // Predicated region
    $region10: #{tpu_custom_call.1} parent=1 // pred_check
      _
    $region11: #{tpu_custom_call.1} parent=1 // pred_check_branch
      %108 = sbr.rel (0) target = $region13
    $region12: #{tpu_custom_call.1} parent=1 // pred_region
      %s110 = ssub.s32 128, 128
      %111 = vsyncadd [#allocation3], %s110
      %s113 = sshll.u32 [#allocation2], 4
      %s114 = int_to_ptr.vmem [resolvable:$true] %s113
      %116 = dma.vmem_to_hbm [thread:$0]  %s114, 128, %s2, [#allocation3]
    $region13: #{tpu_custom_call.1} parent=1 // pred_fallthru
      _
    // Predicated region
    $region14: #{tpu_custom_call.1} parent=1 // pred_check
      _
    $region15: #{tpu_custom_call.1} parent=1 // pred_check_branch
      %118 = sbr.rel (0) target = $region17
    $region16: #{tpu_custom_call.1} parent=1 // pred_region
      %119 = dma.done [#allocation3], 128
    $region17: #{tpu_custom_call.1} parent=1 // pred_fallthru
      _
    %120 = vsyncpa [#allocation3], 1

</llo_original>
